<compile_context>
chip_gen: v5e
topology: v5e:2x2
jax: 0.10.0
libtpu: 0.0.40
codegen_flags: <defaults>
</compile_context>

<pallas_src>
import functools

import jax
import jax.numpy as jnp
from jax import lax
from jax.experimental import pallas as pl
from jax.experimental.pallas import tpu as pltpu


def saint_mlp_kernel(x_ref, w1_ref, b1_ref, w2_ref, b2_ref, w3_ref, b3_ref, o_ref):
    # x_ref: [TILE_B, 13] f32 (batch on sublanes, straight from HBM layout).
    # All activations are kept [features, TILE_B] (batch on lanes) so every
    # matmul result and the final [1, TILE_B] store are lane-dense.
    x_bf = x_ref[...].astype(jnp.bfloat16)  # cast only right before the dot

    # fc1: contract over in_features (dim 1 of both operands, trans-B on MXU)
    #      [64, 13] x [TILE_B, 13] -> [64, TILE_B], f32 accumulate.
    h1 = lax.dot_general(
        w1_ref[...], x_bf,
        dimension_numbers=(((1,), (1,)), ((), ())),
        preferred_element_type=jnp.float32,
    ) + b1_ref[...]
    h1 = jnp.maximum(h1, 0.0)

    # fc2: [32, 64] @ [64, TILE_B] -> [32, TILE_B]
    h2 = jnp.dot(w2_ref[...], h1.astype(jnp.bfloat16),
                 preferred_element_type=jnp.float32) + b2_ref[...]
    h2 = jnp.maximum(h2, 0.0)

    # fc3: [1, 32] @ [32, TILE_B] -> [1, TILE_B]  (no activation), lane-dense store.
    out = jnp.dot(w3_ref[...], h2.astype(jnp.bfloat16),
                  preferred_element_type=jnp.float32) + b3_ref[...]
    o_ref[...] = out.astype(o_ref.dtype)


def _round_up(v, m):
    return ((v + m - 1) // m) * m


@functools.partial(jax.jit, static_argnames=("tile_b",))
def saint_model_forward(x, params, tile_b=None):
    """Fused SaintModel forward.  x: [B, 13] f32 -> [B, 1] f32."""
    w1, b1, w2, b2, w3, b3 = params  # weights [out, in], biases [out, 1]
    B = x.shape[0]

    if tile_b is None:
        # Big tiles to amortize per-step overhead, capped at 8192; keep at
        # least 2 tiles when possible so both v7x TensorCores get work.
        tile_b = min(8192, max(128, _round_up(pl.cdiv(B, 2), 128)))
    num_tiles = pl.cdiv(B, tile_b)

    w1_bf = w1.astype(jnp.bfloat16)
    w2_bf = w2.astype(jnp.bfloat16)
    w3_bf = w3.astype(jnp.bfloat16)

    full = lambda i: (0, 0)  # weights/biases: one resident block

    out = pl.pallas_call(
        saint_mlp_kernel,
        out_shape=jax.ShapeDtypeStruct((1, B), jnp.float32),
        grid=(num_tiles,),
        in_specs=[
            pl.BlockSpec((tile_b, 13), lambda i: (i, 0)),  # x tile, direct [B,13] load
            pl.BlockSpec((64, 13), full),                  # w1 (bf16)
            pl.BlockSpec((64, 1), full),                   # b1 (f32)
            pl.BlockSpec((32, 64), full),                  # w2 (bf16)
            pl.BlockSpec((32, 1), full),                   # b2 (f32)
            pl.BlockSpec((1, 32), full),                   # w3 (bf16)
            pl.BlockSpec((1, 1), full),                    # b3 (f32)
        ],
        out_specs=pl.BlockSpec((1, tile_b), lambda i: (0, i)),
        compiler_params=pltpu.CompilerParams(
            dimension_semantics=("parallel",),
            vmem_limit_bytes=32 * 1024 * 1024,
        ),
    )(x, w1_bf, b1, w2_bf, b2, w3_bf, b3)

    return out.reshape(B, 1)


def init_params(key):
    """Deterministic init matching nn.Linear shapes (13->64->32->1).

    Weights stored [out, in]; biases stored [out, 1] (pre-shaped for a single
    lane-broadcast inside the kernel)."""
    k1, k2, k3, k4, k5, k6 = jax.random.split(key, 6)

    def uniform_init(k, shape, fan_in):
        bound = 1.0 / jnp.sqrt(fan_in)
        return jax.random.uniform(k, shape, jnp.float32, -bound, bound)

    w1 = uniform_init(k1, (64, 13), 13.0)
    b1 = uniform_init(k2, (64, 1), 13.0)
    w2 = uniform_init(k3, (32, 64), 64.0)
    b2 = uniform_init(k4, (32, 1), 64.0)
    w3 = uniform_init(k5, (1, 32), 32.0)
    b3 = uniform_init(k6, (1, 1), 32.0)
    return (w1, b1, w2, b2, w3, b3)


def reference_forward(x, params):
    """Pure-JAX reference mirroring the kernel's bf16 dot inputs / f32 accumulate."""
    w1, b1, w2, b2, w3, b3 = params
    q = lambda a: a.astype(jnp.bfloat16).astype(jnp.float32)
    h1 = jnp.maximum(q(x) @ q(w1).T + b1.T, 0.0)
    h2 = jnp.maximum(q(h1) @ q(w2).T + b2.T, 0.0)
    return q(h2) @ q(w3).T + b3.T


if __name__ == "__main__":
    key = jax.random.PRNGKey(0)
    k_params, k_x = jax.random.split(key)

    params = init_params(k_params)

    # B = 1000 exercises the batch grid (2 tiles of 512 via the >=2-tile rule)
    # and the ragged-tail boundary-masking path while staying small.
    B = 1000
    x = jax.random.normal(k_x, (B, 13), dtype=jnp.float32)

    out = jax.block_until_ready(saint_model_forward(x, params))

    ref = reference_forward(x, params)
    assert out.shape == (B, 1)
    assert jnp.allclose(out, ref, atol=2e-2, rtol=2e-2), "Pallas output mismatch vs reference"

    print("KERNEL_OK")
</pallas_src>

<mosaic_0001>
module attributes {stable_mosaic.version = 11 : i64} {
  func.func @saint_mlp_kernel(%arg0: i32, %arg1: memref<512x13xf32, #tpu.memory_space<vmem>>, %arg2: memref<64x13xbf16, #tpu.memory_space<vmem>>, %arg3: memref<64x1xf32, #tpu.memory_space<vmem>>, %arg4: memref<32x64xbf16, #tpu.memory_space<vmem>>, %arg5: memref<32x1xf32, #tpu.memory_space<vmem>>, %arg6: memref<1x32xbf16, #tpu.memory_space<vmem>>, %arg7: memref<1x1xf32, #tpu.memory_space<vmem>>, %arg8: memref<1x512xf32, #tpu.memory_space<vmem>>) attributes {dimension_semantics = [#tpu.dimension_semantics<parallel>], iteration_bounds = array<i64: 2>, scalar_prefetch = 0 : i64, scratch_operands = 0 : i64, tpu.core_type = #tpu.core_type<tc>, window_params = [{transform_indices = @transform_0, window_bounds = array<i64: 512, 13>}, {pipeline_mode = #tpu.pipeline_mode<synchronous>, transform_indices = @transform_1, window_bounds = array<i64: 64, 13>}, {pipeline_mode = #tpu.pipeline_mode<synchronous>, transform_indices = @transform_2, window_bounds = array<i64: 64, 1>}, {pipeline_mode = #tpu.pipeline_mode<synchronous>, transform_indices = @transform_3, window_bounds = array<i64: 32, 64>}, {pipeline_mode = #tpu.pipeline_mode<synchronous>, transform_indices = @transform_4, window_bounds = array<i64: 32, 1>}, {pipeline_mode = #tpu.pipeline_mode<synchronous>, transform_indices = @transform_5, window_bounds = array<i64: 1, 32>}, {pipeline_mode = #tpu.pipeline_mode<synchronous>, transform_indices = @transform_6, window_bounds = array<i64: 1, 1>}, {transform_indices = @transform_7, window_bounds = array<i64: 1, 512>}]} {
    %c0 = arith.constant 0 : index
    %c0_0 = arith.constant 0 : index
    %0 = vector.load %arg1[%c0, %c0_0] : memref<512x13xf32, #tpu.memory_space<vmem>>, vector<512x13xf32>
    %1 = arith.truncf %0 : vector<512x13xf32> to vector<512x13xbf16>
    %c0_1 = arith.constant 0 : index
    %c0_2 = arith.constant 0 : index
    %2 = vector.load %arg2[%c0_1, %c0_2] : memref<64x13xbf16, #tpu.memory_space<vmem>>, vector<64x13xbf16>
    %cst = arith.constant dense<0.000000e+00> : vector<64x512xf32>
    %3 = tpu.matmul %2, %1, %cst {dimension_numbers = #tpu.dot_dimension_numbers<[1], [1], [0], [0], [0, 0, 1, 0], [], []>} : vector<64x13xbf16>, vector<512x13xbf16>, vector<64x512xf32> -> vector<64x512xf32>
    %c0_3 = arith.constant 0 : index
    %c0_4 = arith.constant 0 : index
    %4 = vector.load %arg3[%c0_3, %c0_4] : memref<64x1xf32, #tpu.memory_space<vmem>>, vector<64x1xf32>
    %5 = vector.broadcast %4 : vector<64x1xf32> to vector<64x512xf32>
    %6 = arith.addf %3, %5 : vector<64x512xf32>
    %cst_5 = arith.constant 0.000000e+00 : f32
    %7 = vector.broadcast %cst_5 : f32 to vector<64x512xf32>
    %8 = arith.maximumf %6, %7 : vector<64x512xf32>
    %c0_6 = arith.constant 0 : index
    %c0_7 = arith.constant 0 : index
    %9 = vector.load %arg4[%c0_6, %c0_7] : memref<32x64xbf16, #tpu.memory_space<vmem>>, vector<32x64xbf16>
    %10 = arith.truncf %8 : vector<64x512xf32> to vector<64x512xbf16>
    %cst_8 = arith.constant dense<0.000000e+00> : vector<32x512xf32>
    %11 = tpu.matmul %9, %10, %cst_8 {dimension_numbers = #tpu.dot_dimension_numbers<[1], [0], [0], [1], [0, 0, 1, 1], [], []>} : vector<32x64xbf16>, vector<64x512xbf16>, vector<32x512xf32> -> vector<32x512xf32>
    %c0_9 = arith.constant 0 : index
    %c0_10 = arith.constant 0 : index
    %12 = vector.load %arg5[%c0_9, %c0_10] : memref<32x1xf32, #tpu.memory_space<vmem>>, vector<32x1xf32>
    %13 = vector.broadcast %12 : vector<32x1xf32> to vector<32x512xf32>
    %14 = arith.addf %11, %13 : vector<32x512xf32>
    %cst_11 = arith.constant 0.000000e+00 : f32
    %15 = vector.broadcast %cst_11 : f32 to vector<32x512xf32>
    %16 = arith.maximumf %14, %15 : vector<32x512xf32>
    %c0_12 = arith.constant 0 : index
    %c0_13 = arith.constant 0 : index
    %17 = vector.load %arg6[%c0_12, %c0_13] : memref<1x32xbf16, #tpu.memory_space<vmem>>, vector<1x32xbf16>
    %18 = arith.truncf %16 : vector<32x512xf32> to vector<32x512xbf16>
    %cst_14 = arith.constant dense<0.000000e+00> : vector<1x512xf32>
    %19 = tpu.matmul %17, %18, %cst_14 {dimension_numbers = #tpu.dot_dimension_numbers<[1], [0], [0], [1], [0, 0, 1, 1], [], []>} : vector<1x32xbf16>, vector<32x512xbf16>, vector<1x512xf32> -> vector<1x512xf32>
    %c0_15 = arith.constant 0 : index
    %c0_16 = arith.constant 0 : index
    %20 = vector.load %arg7[%c0_15, %c0_16] : memref<1x1xf32, #tpu.memory_space<vmem>>, vector<1x1xf32>
    %21 = vector.broadcast %20 : vector<1x1xf32> to vector<1x512xf32>
    %22 = arith.addf %19, %21 : vector<1x512xf32>
    %c0_17 = arith.constant 0 : index
    %c0_18 = arith.constant 0 : index
    %23 = vector.load %arg8[%c0_17, %c0_18] : memref<1x512xf32, #tpu.memory_space<vmem>>, vector<1x512xf32>
    tpu.vector_store %arg8[%c0_17, %c0_18], %22 {strides = array<i32>} : memref<1x512xf32, #tpu.memory_space<vmem>>, vector<1x512xf32>,
    return
  }
  func.func @transform_0(%arg0: i32) -> (i32, i32) {
    %c0_i32 = arith.constant 0 : i32
    %c0_i32_0 = arith.constant 0 : i32
    return %arg0, %c0_i32 : i32, i32
  }
  func.func @transform_1(%arg0: i32) -> (i32, i32) {
    %c0_i32 = arith.constant 0 : i32
    %c0_i32_0 = arith.constant 0 : i32
    %c0_i32_1 = arith.constant 0 : i32
    return %c0_i32, %c0_i32_0 : i32, i32
  }
  func.func @transform_2(%arg0: i32) -> (i32, i32) {
    %c0_i32 = arith.constant 0 : i32
    %c0_i32_0 = arith.constant 0 : i32
    %c0_i32_1 = arith.constant 0 : i32
    return %c0_i32, %c0_i32_0 : i32, i32
  }
  func.func @transform_3(%arg0: i32) -> (i32, i32) {
    %c0_i32 = arith.constant 0 : i32
    %c0_i32_0 = arith.constant 0 : i32
    %c0_i32_1 = arith.constant 0 : i32
    return %c0_i32, %c0_i32_0 : i32, i32
  }
  func.func @transform_4(%arg0: i32) -> (i32, i32) {
    %c0_i32 = arith.constant 0 : i32
    %c0_i32_0 = arith.constant 0 : i32
    %c0_i32_1 = arith.constant 0 : i32
    return %c0_i32, %c0_i32_0 : i32, i32
  }
  func.func @transform_5(%arg0: i32) -> (i32, i32) {
    %c0_i32 = arith.constant 0 : i32
    %c0_i32_0 = arith.constant 0 : i32
    %c0_i32_1 = arith.constant 0 : i32
    return %c0_i32, %c0_i32_0 : i32, i32
  }
  func.func @transform_6(%arg0: i32) -> (i32, i32) {
    %c0_i32 = arith.constant 0 : i32
    %c0_i32_0 = arith.constant 0 : i32
    %c0_i32_1 = arith.constant 0 : i32
    return %c0_i32, %c0_i32_0 : i32, i32
  }
  func.func @transform_7(%arg0: i32) -> (i32, i32) {
    %c0_i32 = arith.constant 0 : i32
    %c0_i32_0 = arith.constant 0 : i32
    return %c0_i32, %arg0 : i32, i32
  }
}

</mosaic_0001>

<llo_original>
// kernel: saint_model_forward.1
$region0: #{saint_model_forward.1}
  #allocation0 [shape = 'u32[]', space=smem, size = 0x4, offset = 0x4, fixed_abs, tag = 'smem constant byte address 0x4 - core index']
  #allocation1 [shape = 'u32[72,128]{1,0:T(1,128)}', space=vmem, size = 0x9000, scoped, tag = 'internal scratch']
  #allocation2 [shape = 'f32[1,1]{1,0:T(1,128)S(1)}', space=vmem, size = 0x200, scoped, tag = 'scoped memory for saint_model_forward.1']
  %s0 = inlined_call_operand.vmem [shape: f32[1000,13], index: 0, kind: input, shape index: {}]
  %s1 = inlined_call_operand.vmem [shape: bf16[64,13], index: 1, kind: input, shape index: {}]
  %s2 = inlined_call_operand.vmem [shape: f32[64,1], index: 2, kind: input, shape index: {}]
  %s3 = inlined_call_operand.vmem [shape: bf16[32,64], index: 3, kind: input, shape index: {}]
  %s4 = inlined_call_operand.vmem [shape: f32[32,1], index: 4, kind: input, shape index: {}]
  %s5 = inlined_call_operand.vmem [shape: bf16[1,32], index: 5, kind: input, shape index: {}]
  %s6 = inlined_call_operand.<no memory space> [shape: f32[1,1], index: 6, kind: input, shape index: {}]
  %s7 = inlined_call_operand.hbm [shape: f32[1,1000], index: 7, kind: output, shape index: {}]
  %s8 = sld [smem:[#allocation0]]
  $region61: #{saint_model_forward.1} parent=0
    _
  %s10 = ssub.s32 1, %s8
  %s11 = scalar_select 0, %s10, %s8
  %v12 = vstv %s6
  %13 = vst [vmem:[#allocation2] sm:$0x1] %v12
  $region1: #{saint_model_forward.1} parent=0
    #allocation3 [shape = 'u8[4096]{0}', space=vmem, size = 0x1000, scoped, tag = 'output window, operand 0']
    #allocation4 [shape = 's32[2]{0}', space=sflag, size = 0x8, scoped, tag = 'scoped memory for saint_model_forward.1']
    %14 = vsyncpa [#allocation4], 0
    %s15 = scalar_lea.sflag [#allocation4], 1
    %16 = vsyncpa %s15, 0
    loop: start=0, step=1, limit=4
    $region2: #{saint_model_forward.1} parent=1 // loop_pre_header
      _
    $region3: #{saint_model_forward.1} parent=1 // loop_header
      %s18 = sphi 0, %s22
      %p19 = scmp.ge.s32.totalorder %s18, 4
      %s28 = sphi 0, %s30
      %s31 = sphi 0, %s28
      %s32 = sphi 0, %s31
      %s48 = sphi 0, %s32
      %s52 = sphi 0, %s52
      %s54 = sphi 0, %s52
      %s55 = sphi 0, %s54
      %s69 = sphi 0, %s55
      %s73 = sphi 0, %s73
      %s75 = sphi 0, %s73
      %s76 = sphi 0, %s75
      %s90 = sphi 0, %s76
      %s94 = sphi 0, %s94
      %s96 = sphi 0, %s94
      %s97 = sphi 0, %s96
      %s111 = sphi 0, %s97
      %s115 = sphi 0, %s115
      %s117 = sphi 0, %s115
      %s118 = sphi 0, %s117
      %s132 = sphi 0, %s118
      %s136 = sphi 0, %s136
      %s138 = sphi 0, %s136
      %s139 = sphi 0, %s138
      %s153 = sphi 0, %s139
      %s157 = sphi 0, %s157
      %s159 = sphi 0, %s157
      %s160 = sphi 0, %s159
      %s174 = sphi 0, %s160
      %s180 = sphi 0, %s182
      %s183 = sphi 0, %s180
      %s184 = sphi 0, %s183
      %s200 = sphi 0, %s184
    $region4: #{saint_model_forward.1} parent=1 // loop_header_branch
      %21 = sbr.rel (%p19) target = $region8
    $region5: #{saint_model_forward.1} parent=1 // loop_body
      %s23 = ssub.s32 %s18, 1
      %s24 = ssub.s32 %s18, 2
      %s25 = sadd.s32 %s18, 1
      %s26 = ssub.s32 %s18, %s25
      %p27 = scmp.eq.s32.totalorder %s26, 0
      %s29 = sadd.s32 %s28, 1
      %s30 = scalar_select %p27, %s28, %s29
      %p33 = pneg %p27
      %p34 = scmp.eq.s32.totalorder %s18, 1
      %p35 = por %p33, %p34
      %p36 = scmp.ne.s32.totalorder %s28, %s31
      %p37 = scmp.eq.s32.totalorder %s18, 0
      %p38 = por %p36, %p37
      %p39 = scmp.ne.s32.totalorder %s28, %s31
      %p40 = scmp.eq.s32.totalorder %s23, 1
      %p41 = por %p39, %p40
      %p42 = scmp.ne.s32.totalorder %s31, %s32
      %p43 = scmp.eq.s32.totalorder %s23, 0
      %p44 = por %p42, %p43
      %p45 = scmp.ne.s32.totalorder %s31, %s32
      %p46 = scmp.eq.s32.totalorder %s24, 1
      %p47 = por %p45, %p46
      %p49 = scmp.ne.s32.totalorder %s32, %s48
      %p50 = scmp.eq.s32.totalorder %s24, 0
      %p51 = por %p49, %p50
      %s53 = sadd.s32 %s52, 1
      %p56 = scmp.eq.s32.totalorder %s18, 1
      %p57 = scmp.ne.s32.totalorder %s52, %s54
      %p58 = scmp.eq.s32.totalorder %s18, 0
      %p59 = por %p57, %p58
      %p60 = scmp.ne.s32.totalorder %s52, %s54
      %p61 = scmp.eq.s32.totalorder %s23, 1
      %p62 = por %p60, %p61
      %p63 = scmp.ne.s32.totalorder %s54, %s55
      %p64 = scmp.eq.s32.totalorder %s23, 0
      %p65 = por %p63, %p64
      %p66 = scmp.ne.s32.totalorder %s54, %s55
      %p67 = scmp.eq.s32.totalorder %s24, 1
      %p68 = por %p66, %p67
      %p70 = scmp.ne.s32.totalorder %s55, %s69
      %p71 = scmp.eq.s32.totalorder %s24, 0
      %p72 = por %p70, %p71
      %s74 = sadd.s32 %s73, 1
      %p77 = scmp.eq.s32.totalorder %s18, 1
      %p78 = scmp.ne.s32.totalorder %s73, %s75
      %p79 = scmp.eq.s32.totalorder %s18, 0
      %p80 = por %p78, %p79
      %p81 = scmp.ne.s32.totalorder %s73, %s75
      %p82 = scmp.eq.s32.totalorder %s23, 1
      %p83 = por %p81, %p82
      %p84 = scmp.ne.s32.totalorder %s75, %s76
      %p85 = scmp.eq.s32.totalorder %s23, 0
      %p86 = por %p84, %p85
      %p87 = scmp.ne.s32.totalorder %s75, %s76
      %p88 = scmp.eq.s32.totalorder %s24, 1
      %p89 = por %p87, %p88
      %p91 = scmp.ne.s32.totalorder %s76, %s90
      %p92 = scmp.eq.s32.totalorder %s24, 0
      %p93 = por %p91, %p92
      %s95 = sadd.s32 %s94, 1
      %p98 = scmp.eq.s32.totalorder %s18, 1
      %p99 = scmp.ne.s32.totalorder %s94, %s96
      %p100 = scmp.eq.s32.totalorder %s18, 0
      %p101 = por %p99, %p100
      %p102 = scmp.ne.s32.totalorder %s94, %s96
      %p103 = scmp.eq.s32.totalorder %s23, 1
      %p104 = por %p102, %p103
      %p105 = scmp.ne.s32.totalorder %s96, %s97
      %p106 = scmp.eq.s32.totalorder %s23, 0
      %p107 = por %p105, %p106
      %p108 = scmp.ne.s32.totalorder %s96, %s97
      %p109 = scmp.eq.s32.totalorder %s24, 1
      %p110 = por %p108, %p109
      %p112 = scmp.ne.s32.totalorder %s97, %s111
      %p113 = scmp.eq.s32.totalorder %s24, 0
      %p114 = por %p112, %p113
      %s116 = sadd.s32 %s115, 1
      %p119 = scmp.eq.s32.totalorder %s18, 1
      %p120 = scmp.ne.s32.totalorder %s115, %s117
      %p121 = scmp.eq.s32.totalorder %s18, 0
      %p122 = por %p120, %p121
      %p123 = scmp.ne.s32.totalorder %s115, %s117
      %p124 = scmp.eq.s32.totalorder %s23, 1
      %p125 = por %p123, %p124
      %p126 = scmp.ne.s32.totalorder %s117, %s118
      %p127 = scmp.eq.s32.totalorder %s23, 0
      %p128 = por %p126, %p127
      %p129 = scmp.ne.s32.totalorder %s117, %s118
      %p130 = scmp.eq.s32.totalorder %s24, 1
      %p131 = por %p129, %p130
      %p133 = scmp.ne.s32.totalorder %s118, %s132
      %p134 = scmp.eq.s32.totalorder %s24, 0
      %p135 = por %p133, %p134
      %s137 = sadd.s32 %s136, 1
      %p140 = scmp.eq.s32.totalorder %s18, 1
      %p141 = scmp.ne.s32.totalorder %s136, %s138
      %p142 = scmp.eq.s32.totalorder %s18, 0
      %p143 = por %p141, %p142
      %p144 = scmp.ne.s32.totalorder %s136, %s138
      %p145 = scmp.eq.s32.totalorder %s23, 1
      %p146 = por %p144, %p145
      %p147 = scmp.ne.s32.totalorder %s138, %s139
      %p148 = scmp.eq.s32.totalorder %s23, 0
      %p149 = por %p147, %p148
      %p150 = scmp.ne.s32.totalorder %s138, %s139
      %p151 = scmp.eq.s32.totalorder %s24, 1
      %p152 = por %p150, %p151
      %p154 = scmp.ne.s32.totalorder %s139, %s153
      %p155 = scmp.eq.s32.totalorder %s24, 0
      %p156 = por %p154, %p155
      %s158 = sadd.s32 %s157, 1
      %p161 = scmp.eq.s32.totalorder %s18, 1
      %p162 = scmp.ne.s32.totalorder %s157, %s159
      %p163 = scmp.eq.s32.totalorder %s18, 0
      %p164 = por %p162, %p163
      %p165 = scmp.ne.s32.totalorder %s157, %s159
      %p166 = scmp.eq.s32.totalorder %s23, 1
      %p167 = por %p165, %p166
      %p168 = scmp.ne.s32.totalorder %s159, %s160
      %p169 = scmp.eq.s32.totalorder %s23, 0
      %p170 = por %p168, %p169
      %p171 = scmp.ne.s32.totalorder %s159, %s160
      %p172 = scmp.eq.s32.totalorder %s24, 1
      %p173 = por %p171, %p172
      %p175 = scmp.ne.s32.totalorder %s160, %s174
      %p176 = scmp.eq.s32.totalorder %s24, 0
      %p177 = por %p175, %p176
      %s178 = ssub.s32 %s18, %s25
      %p179 = scmp.eq.s32.totalorder %s178, 0
      %s181 = sadd.s32 %s180, 1
      %s182 = scalar_select %p179, %s180, %s181
      %p185 = pneg %p179
      %p186 = scmp.eq.s32.totalorder %s18, 1
      %p187 = por %p185, %p186
      %p188 = scmp.ne.s32.totalorder %s180, %s183
      %p189 = scmp.eq.s32.totalorder %s18, 0
      %p190 = por %p188, %p189
      %p191 = scmp.ne.s32.totalorder %s180, %s183
      %p192 = scmp.eq.s32.totalorder %s23, 1
      %p193 = por %p191, %p192
      %p194 = scmp.ne.s32.totalorder %s183, %s184
      %p195 = scmp.eq.s32.totalorder %s23, 0
      %p196 = por %p194, %p195
      %p197 = scmp.ne.s32.totalorder %s183, %s184
      %p198 = scmp.eq.s32.totalorder %s24, 1
      %p199 = por %p197, %p198
      %p201 = scmp.ne.s32.totalorder %s184, %s200
      %p202 = scmp.eq.s32.totalorder %s24, 0
      %p203 = por %p201, %p202
      %p204 = scmp.le.s32.totalorder 1, %s18
      %p205 = scmp.lt.s32.totalorder %s18, 3
      %p206 = pnand %p204, %p205
      %p207 = pneg %p206
      // Predicated region
      $region9: #{saint_model_forward.1} parent=5 // pred_check
        _
      $region10: #{saint_model_forward.1} parent=5 // pred_check_branch
        %209 = sbr.rel (%p206) target = $region12
      $region11: #{saint_model_forward.1} parent=5 // pred_region
        %s210 = ssub.s32 %s18, 1
        // Predicated region
        $region13: #{saint_model_forward.1} parent=11 // pred_check
          %p211 = pneg %p65
        $region14: #{saint_model_forward.1} parent=11 // pred_check_branch
          %213 = sbr.rel (%p211) target = $region16
        $region15: #{saint_model_forward.1} parent=11 // pred_region
          _
        $region16: #{saint_model_forward.1} parent=11 // pred_fallthru
          _
        // Predicated region
        $region17: #{saint_model_forward.1} parent=11 // pred_check
          %p214 = pneg %p86
        $region18: #{saint_model_forward.1} parent=11 // pred_check_branch
          %216 = sbr.rel (%p214) target = $region20
        $region19: #{saint_model_forward.1} parent=11 // pred_region
          _
        $region20: #{saint_model_forward.1} parent=11 // pred_fallthru
          _
        // Predicated region
        $region21: #{saint_model_forward.1} parent=11 // pred_check
          %p217 = pneg %p107
        $region22: #{saint_model_forward.1} parent=11 // pred_check_branch
          %219 = sbr.rel (%p217) target = $region24
        $region23: #{saint_model_forward.1} parent=11 // pred_region
          _
        $region24: #{saint_model_forward.1} parent=11 // pred_fallthru
          _
        // Predicated region
        $region25: #{saint_model_forward.1} parent=11 // pred_check
          %p220 = pneg %p128
        $region26: #{saint_model_forward.1} parent=11 // pred_check_branch
          %222 = sbr.rel (%p220) target = $region28
        $region27: #{saint_model_forward.1} parent=11 // pred_region
          _
        $region28: #{saint_model_forward.1} parent=11 // pred_fallthru
          _
        // Predicated region
        $region29: #{saint_model_forward.1} parent=11 // pred_check
          %p223 = pneg %p149
        $region30: #{saint_model_forward.1} parent=11 // pred_check_branch
          %225 = sbr.rel (%p223) target = $region32
        $region31: #{saint_model_forward.1} parent=11 // pred_region
          _
        $region32: #{saint_model_forward.1} parent=11 // pred_fallthru
          _
        // Predicated region
        $region33: #{saint_model_forward.1} parent=11 // pred_check
          %p226 = pneg %p170
        $region34: #{saint_model_forward.1} parent=11 // pred_check_branch
          %228 = sbr.rel (%p226) target = $region36
        $region35: #{saint_model_forward.1} parent=11 // pred_region
          _
        $region36: #{saint_model_forward.1} parent=11 // pred_fallthru
          _
      $region12: #{saint_model_forward.1} parent=5 // pred_fallthru
        _
      %p229 = scmp.lt.s32.totalorder %s18, 2
      // Predicated region
      $region37: #{saint_model_forward.1} parent=5 // pred_check
        %p230 = pneg %p229
      $region38: #{saint_model_forward.1} parent=5 // pred_check_branch
        %232 = sbr.rel (%p230) target = $region40
      $region39: #{saint_model_forward.1} parent=5 // pred_region
        // Predicated region
        $region41: #{saint_model_forward.1} parent=39 // pred_check
          %p233 = pneg %p38
        $region42: #{saint_model_forward.1} parent=39 // pred_check_branch
          %235 = sbr.rel (%p233) target = $region44
        $region43: #{saint_model_forward.1} parent=39 // pred_region
          %s236 = smul.u32 64, %s18
          %s237 = ssub.s32 125, %s236
          %p238 = scmp.lt.s32.totalorder %s237, 64
          %s239 = scalar_select %p238, %s237, 64
          %s240 = smul.u32 8, %s239
          %p241 = scmp.lt.s32.totalorder %s236, 124
          %s242 = scalar_select %p241, %s236, 124
          %s243 = smul.addr %s242, 8
          %s244 = scalar_lea.vmem %s0, %s243
          %s245 = smul.u32 64, %s18
          %s246 = ssub.s32 125, %s245
          %p247 = scmp.lt.s32.totalorder %s246, 64
          %s248 = scalar_select %p247, %s246, 64
          %s249 = smul.u32 8, %s248
        $region44: #{saint_model_forward.1} parent=39 // pred_fallthru
          _
      $region40: #{saint_model_forward.1} parent=5 // pred_fallthru
        _
      %p250 = scmp.le.s32.totalorder 1, %s18
      %p251 = scmp.lt.s32.totalorder %s18, 3
      %p252 = pnand %p250, %p251
      %p253 = pneg %p252
      // Predicated region
      $region45: #{saint_model_forward.1} parent=5 // pred_check
        _
      $region46: #{saint_model_forward.1} parent=5 // pred_check_branch
        %255 = sbr.rel (%p252) target = $region48
      $region47: #{saint_model_forward.1} parent=5 // pred_region
        %s256 = ssub.s32 %s18, 1
        %s257 = smul.u32 64, %s23
        %s258 = ssub.s32 125, %s257
        %p259 = scmp.lt.s32.totalorder %s258, 64
        %s260 = scalar_select %p259, %s258, 64
        %s261 = smul.u32 8, %s260
        %p262 = scmp.lt.s32.totalorder %s257, 124
        %s263 = scalar_select %p262, %s257, 124
        %s264 = smul.addr %s263, 8
        %s265 = scalar_lea.vmem %s0, %s264
        %p266 = pneg %p44
        %p267 = pneg %p41
        %p268 = pneg %p65
        %p269 = pneg %p62
        %p270 = pneg %p86
        %p271 = pneg %p83
        %p272 = pneg %p107
        %p273 = pneg %p104
        %p274 = pneg %p128
        %p275 = pneg %p125
        %p276 = pneg %p149
        %p277 = pneg %p146
        %p278 = pneg %p170
        %p279 = pneg %p167
        %p280 = pneg %p196
        %p281 = pneg %p193
        %s282 = sand.u32 %s183, 1
        %s283 = scalar_lea.sflag [#allocation4], %s282
        %s284 = sand.u32 %s183, 1
        %s285 = smul.addr %s284, 4
        %s286 = scalar_lea.vmem [#allocation3], %s285
        %s287 = smul.u32 64, %s23
        %s288 = ssub.s32 125, %s287
        %p289 = scmp.lt.s32.totalorder %s288, 64
        %s290 = scalar_select %p289, %s288, 64
        %s291 = smul.u32 8, %s290
        %p292 = scmp.lt.s32.totalorder %s287, 124
        %s293 = scalar_select %p292, %s287, 124
        %s294 = smul.addr %s293, 8
        %s295 = scalar_lea.vmem %s0, %s294
        %s296 = smul.u32 64, %s23
        %s297 = ssub.s32 125, %s296
        %p298 = scmp.lt.s32.totalorder %s297, 64
        %s299 = scalar_select %p298, %s297, 64
        %s300 = smul.u32 8, %s299
        %s301 = smul.u32 4, %s23
        %v303 = vld [vmem:[%s295] sm:$0xff]
        %v304 = vld [vmem:[%s295 + $0x8] sm:$0xff]
        %v305 = vld [vmem:[%s295 + $0x10] sm:$0xff]
        %v306 = vld [vmem:[%s295 + $0x18] sm:$0xff]
        %v307 = vld [vmem:[%s295 + $0x20] sm:$0xff]
        %v308 = vld [vmem:[%s295 + $0x28] sm:$0xff]
        %v309 = vld [vmem:[%s295 + $0x30] sm:$0xff]
        %v310 = vld [vmem:[%s295 + $0x38] sm:$0xff]
        %v311 = vld [vmem:[%s295 + $0x40] sm:$0xff]
        %v312 = vld [vmem:[%s295 + $0x48] sm:$0xff]
        %v313 = vld [vmem:[%s295 + $0x50] sm:$0xff]
        %v314 = vld [vmem:[%s295 + $0x58] sm:$0xff]
        %v315 = vld [vmem:[%s295 + $0x60] sm:$0xff]
        %v316 = vld [vmem:[%s295 + $0x68] sm:$0xff]
        %v317 = vld [vmem:[%s295 + $0x70] sm:$0xff]
        %v318 = vld [vmem:[%s295 + $0x78] sm:$0xff]
        %v319 = vld [vmem:[%s295 + $0x80] sm:$0xff]
        %v320 = vld [vmem:[%s295 + $0x88] sm:$0xff]
        %v321 = vld [vmem:[%s295 + $0x90] sm:$0xff]
        %v322 = vld [vmem:[%s295 + $0x98] sm:$0xff]
        %v323 = vld [vmem:[%s295 + $0xa0] sm:$0xff]
        %v324 = vld [vmem:[%s295 + $0xa8] sm:$0xff]
        %v325 = vld [vmem:[%s295 + $0xb0] sm:$0xff]
        %v326 = vld [vmem:[%s295 + $0xb8] sm:$0xff]
        %v327 = vld [vmem:[%s295 + $0xc0] sm:$0xff]
        %v328 = vld [vmem:[%s295 + $0xc8] sm:$0xff]
        %v329 = vld [vmem:[%s295 + $0xd0] sm:$0xff]
        %v330 = vld [vmem:[%s295 + $0xd8] sm:$0xff]
        %v331 = vld [vmem:[%s295 + $0xe0] sm:$0xff]
        %v332 = vld [vmem:[%s295 + $0xe8] sm:$0xff]
        %v333 = vld [vmem:[%s295 + $0xf0] sm:$0xff]
        %v334 = vld [vmem:[%s295 + $0xf8] sm:$0xff]
        %v335 = vld [vmem:[%s295 + $0x100] sm:$0xff]
        %v336 = vld [vmem:[%s295 + $0x108] sm:$0xff]
        %v337 = vld [vmem:[%s295 + $0x110] sm:$0xff]
        %v338 = vld [vmem:[%s295 + $0x118] sm:$0xff]
        %v339 = vld [vmem:[%s295 + $0x120] sm:$0xff]
        %v340 = vld [vmem:[%s295 + $0x128] sm:$0xff]
        %v341 = vld [vmem:[%s295 + $0x130] sm:$0xff]
        %v342 = vld [vmem:[%s295 + $0x138] sm:$0xff]
        %v343 = vld [vmem:[%s295 + $0x140] sm:$0xff]
        %v344 = vld [vmem:[%s295 + $0x148] sm:$0xff]
        %v345 = vld [vmem:[%s295 + $0x150] sm:$0xff]
        %v346 = vld [vmem:[%s295 + $0x158] sm:$0xff]
        %v347 = vld [vmem:[%s295 + $0x160] sm:$0xff]
        %v348 = vld [vmem:[%s295 + $0x168] sm:$0xff]
        %v349 = vld [vmem:[%s295 + $0x170] sm:$0xff]
        %v350 = vld [vmem:[%s295 + $0x178] sm:$0xff]
        %v351 = vld [vmem:[%s295 + $0x180] sm:$0xff]
        %v352 = vld [vmem:[%s295 + $0x188] sm:$0xff]
        %v353 = vld [vmem:[%s295 + $0x190] sm:$0xff]
        %v354 = vld [vmem:[%s295 + $0x198] sm:$0xff]
        %v355 = vld [vmem:[%s295 + $0x1a0] sm:$0xff]
        %v356 = vld [vmem:[%s295 + $0x1a8] sm:$0xff]
        %v357 = vld [vmem:[%s295 + $0x1b0] sm:$0xff]
        %v358 = vld [vmem:[%s295 + $0x1b8] sm:$0xff]
        %v359 = vld [vmem:[%s295 + $0x1c0] sm:$0xff]
        %v360 = vld [vmem:[%s295 + $0x1c8] sm:$0xff]
        %v361 = vld [vmem:[%s295 + $0x1d0] sm:$0xff]
        %v362 = vld [vmem:[%s295 + $0x1d8] sm:$0xff]
        %v363 = vld [vmem:[%s295 + $0x1e0] sm:$0xff]
        %v364 = vld [vmem:[%s295 + $0x1e8] sm:$0xff]
        %v365 = vld [vmem:[%s295 + $0x1f0] sm:$0xff]
        %v366 = vld [vmem:[%s295 + $0x1f8] sm:$0xff]
        %v367 = vpack.c.bf16 %v304, %v303
        %v368 = vpack.c.bf16 %v306, %v305
        %v369 = vpack.c.bf16 %v308, %v307
        %v370 = vpack.c.bf16 %v310, %v309
        %v371 = vpack.c.bf16 %v312, %v311
        %v372 = vpack.c.bf16 %v314, %v313
        %v373 = vpack.c.bf16 %v316, %v315
        %v374 = vpack.c.bf16 %v318, %v317
        %v375 = vpack.c.bf16 %v320, %v319
        %v376 = vpack.c.bf16 %v322, %v321
        %v377 = vpack.c.bf16 %v324, %v323
        %v378 = vpack.c.bf16 %v326, %v325
        %v379 = vpack.c.bf16 %v328, %v327
        %v380 = vpack.c.bf16 %v330, %v329
        %v381 = vpack.c.bf16 %v332, %v331
        %v382 = vpack.c.bf16 %v334, %v333
        %v383 = vpack.c.bf16 %v336, %v335
        %v384 = vpack.c.bf16 %v338, %v337
        %v385 = vpack.c.bf16 %v340, %v339
        %v386 = vpack.c.bf16 %v342, %v341
        %v387 = vpack.c.bf16 %v344, %v343
        %v388 = vpack.c.bf16 %v346, %v345
        %v389 = vpack.c.bf16 %v348, %v347
        %v390 = vpack.c.bf16 %v350, %v349
        %v391 = vpack.c.bf16 %v352, %v351
        %v392 = vpack.c.bf16 %v354, %v353
        %v393 = vpack.c.bf16 %v356, %v355
        %v394 = vpack.c.bf16 %v358, %v357
        %v395 = vpack.c.bf16 %v360, %v359
        %v396 = vpack.c.bf16 %v362, %v361
        %v397 = vpack.c.bf16 %v364, %v363
        %v398 = vpack.c.bf16 %v366, %v365
        %v399 = vld [vmem:[%s1] sm:$0xf]
        %v400 = vld [vmem:[%s1 + $0x4] sm:$0xf]
        %v401 = vld [vmem:[%s1 + $0x8] sm:$0xf]
        %v402 = vld [vmem:[%s1 + $0xc] sm:$0xf]
        %v403 = vld [vmem:[%s1 + $0x10] sm:$0xf]
        %v404 = vld [vmem:[%s1 + $0x14] sm:$0xf]
        %v405 = vld [vmem:[%s1 + $0x18] sm:$0xf]
        %v406 = vld [vmem:[%s1 + $0x1c] sm:$0xf]
        %v407 = vld [vmem:[%s2] sm:$0xff]
        %v408 = vld [vmem:[%s2 + $0x8] sm:$0xff]
        %v409 = vld [vmem:[%s2 + $0x10] sm:$0xff]
        %v410 = vld [vmem:[%s2 + $0x18] sm:$0xff]
        %v411 = vld [vmem:[%s2 + $0x20] sm:$0xff]
        %v412 = vld [vmem:[%s2 + $0x28] sm:$0xff]
        %v413 = vld [vmem:[%s2 + $0x30] sm:$0xff]
        %v414 = vld [vmem:[%s2 + $0x38] sm:$0xff]
        %416 = vset.pattern.permute.xlu0 0
        %417 = vperm.xlu0 %416, %v407
        %v418 = vpop.permute.xlu0 %417
        %421 = vset.pattern.permute.xlu0 0
        %422 = vperm.xlu0 %421, %v408
        %v423 = vpop.permute.xlu0 %422
        %426 = vset.pattern.permute.xlu0 0
        %427 = vperm.xlu0 %426, %v409
        %v428 = vpop.permute.xlu0 %427
        %431 = vset.pattern.permute.xlu0 0
        %432 = vperm.xlu0 %431, %v410
        %v433 = vpop.permute.xlu0 %432
        %436 = vset.pattern.permute.xlu0 0
        %437 = vperm.xlu0 %436, %v411
        %v438 = vpop.permute.xlu0 %437
        %441 = vset.pattern.permute.xlu0 0
        %442 = vperm.xlu0 %441, %v412
        %v443 = vpop.permute.xlu0 %442
        %446 = vset.pattern.permute.xlu0 0
        %447 = vperm.xlu0 %446, %v413
        %v448 = vpop.permute.xlu0 %447
        %451 = vset.pattern.permute.xlu0 0
        %452 = vperm.xlu0 %451, %v414
        %v453 = vpop.permute.xlu0 %452
        %v463 = vunpack.c.l.b16 %v399
        %v464 = vunpack.c.l.b16 %v400
        %v465 = vunpack.c.l.b16 %v401
        %v466 = vunpack.c.l.b16 %v402
        %v467 = vunpack.c.l.b16 %v403
        %v468 = vunpack.c.l.b16 %v404
        %v469 = vunpack.c.l.b16 %v405
        %v470 = vunpack.c.l.b16 %v406
        %v471 = vpack.c.b16 %v464, %v463
        %v472 = vpack.c.b16 %v466, %v465
        %v473 = vpack.c.b16 %v468, %v467
        %v474 = vpack.c.b16 %v470, %v469
        %vm475 = vcmask 105472
        %v477 = vsel %vm475, %v471, 0
        %v480 = vsel %vm475, %v472, 0
        %v483 = vsel %vm475, %v473, 0
        %v486 = vsel %vm475, %v474, 0
        %v489 = vsel %vm475, %v367, 0
        %v492 = vsel %vm475, %v368, 0
        %v495 = vsel %vm475, %v369, 0
        %v498 = vsel %vm475, %v370, 0
        %v501 = vsel %vm475, %v371, 0
        %v504 = vsel %vm475, %v372, 0
        %v507 = vsel %vm475, %v373, 0
        %v510 = vsel %vm475, %v374, 0
        %v513 = vsel %vm475, %v375, 0
        %v516 = vsel %vm475, %v376, 0
        %v519 = vsel %vm475, %v377, 0
        %v522 = vsel %vm475, %v378, 0
        %v525 = vsel %vm475, %v379, 0
        %v528 = vsel %vm475, %v380, 0
        %v531 = vsel %vm475, %v381, 0
        %v534 = vsel %vm475, %v382, 0
        %v537 = vsel %vm475, %v383, 0
        %v540 = vsel %vm475, %v384, 0
        %v543 = vsel %vm475, %v385, 0
        %v546 = vsel %vm475, %v386, 0
        %v549 = vsel %vm475, %v387, 0
        %v552 = vsel %vm475, %v388, 0
        %v555 = vsel %vm475, %v389, 0
        %v558 = vsel %vm475, %v390, 0
        %v561 = vsel %vm475, %v391, 0
        %v564 = vsel %vm475, %v392, 0
        %v567 = vsel %vm475, %v393, 0
        %v570 = vsel %vm475, %v394, 0
        %v573 = vsel %vm475, %v395, 0
        %v576 = vsel %vm475, %v396, 0
        %v579 = vsel %vm475, %v397, 0
        %v582 = vsel %vm475, %v398, 0
        %584 = vmatpush.bf16.xpose.msra.mxu0 %v510
        %585 = vmatpush.bf16.xpose.msra.mxu0 %v507
        %586 = vmatpush.bf16.xpose.msra.mxu0 %v504
        %587 = vmatpush.bf16.xpose.msra.mxu0 %v501
        %588 = vmatpush.bf16.xpose.msra.mxu0 %v498
        %589 = vmatpush.bf16.xpose.msra.mxu0 %v495
        %590 = vmatpush.bf16.xpose.msra.mxu0 %v492
        %591 = vmatpush.bf16.xpose.msra.mxu0 %v489
        %592 = vmatmul.bf16.gmra.mxu0 %v477
        %v593 = vpop.f32.mrf.mxu0
        %v594 = vadd.f32 %v418, %v593
        %v595 = vpop.f32.mrf.mxu0
        %v596 = vadd.f32 %v423, %v595
        %597 = vmatmul.bf16.gmra.mxu0 %v480
        %v598 = vpop.f32.mrf.mxu0
        %v599 = vadd.f32 %v428, %v598
        %v600 = vpop.f32.mrf.mxu0
        %v601 = vadd.f32 %v433, %v600
        %602 = vmatmul.bf16.gmra.mxu0 %v483
        %v603 = vpop.f32.mrf.mxu0
        %v604 = vadd.f32 %v438, %v603
        %v605 = vpop.f32.mrf.mxu0
        %v606 = vadd.f32 %v443, %v605
        %607 = vmatmul.bf16.gmra.mxu0 %v486
        %v608 = vpop.f32.mrf.mxu0
        %v609 = vadd.f32 %v448, %v608
        %v610 = vpop.f32.mrf.mxu0
        %v611 = vadd.f32 %v453, %v610
        %612 = vdwg.mxu0
        %613 = vmatpush.bf16.xpose.msra.mxu0 %v534
        %614 = vmatpush.bf16.xpose.msra.mxu0 %v531
        %615 = vmatpush.bf16.xpose.msra.mxu0 %v528
        %616 = vmatpush.bf16.xpose.msra.mxu0 %v525
        %617 = vmatpush.bf16.xpose.msra.mxu0 %v522
        %618 = vmatpush.bf16.xpose.msra.mxu0 %v519
        %619 = vmatpush.bf16.xpose.msra.mxu0 %v516
        %620 = vmatpush.bf16.xpose.msra.mxu0 %v513
        %621 = vmatmul.bf16.gmra.mxu0 %v477
        %v622 = vpop.f32.mrf.mxu0
        %v623 = vadd.f32 %v418, %v622
        %v624 = vpop.f32.mrf.mxu0
        %v625 = vadd.f32 %v423, %v624
        %626 = vmatmul.bf16.gmra.mxu0 %v480
        %v627 = vpop.f32.mrf.mxu0
        %v628 = vadd.f32 %v428, %v627
        %v629 = vpop.f32.mrf.mxu0
        %v630 = vadd.f32 %v433, %v629
        %631 = vmatmul.bf16.gmra.mxu0 %v483
        %v632 = vpop.f32.mrf.mxu0
        %v633 = vadd.f32 %v438, %v632
        %v634 = vpop.f32.mrf.mxu0
        %v635 = vadd.f32 %v443, %v634
        %636 = vmatmul.bf16.gmra.mxu0 %v486
        %v637 = vpop.f32.mrf.mxu0
        %v638 = vadd.f32 %v448, %v637
        %v639 = vpop.f32.mrf.mxu0
        %v640 = vadd.f32 %v453, %v639
        %641 = vdwg.mxu0
        %642 = vmatpush.bf16.xpose.msra.mxu0 %v558
        %643 = vmatpush.bf16.xpose.msra.mxu0 %v555
        %644 = vmatpush.bf16.xpose.msra.mxu0 %v552
        %645 = vmatpush.bf16.xpose.msra.mxu0 %v549
        %646 = vmatpush.bf16.xpose.msra.mxu0 %v546
        %647 = vmatpush.bf16.xpose.msra.mxu0 %v543
        %648 = vmatpush.bf16.xpose.msra.mxu0 %v540
        %649 = vmatpush.bf16.xpose.msra.mxu0 %v537
        %650 = vmatmul.bf16.gmra.mxu0 %v477
        %v651 = vpop.f32.mrf.mxu0
        %v652 = vadd.f32 %v418, %v651
        %v653 = vpop.f32.mrf.mxu0
        %v654 = vadd.f32 %v423, %v653
        %655 = vmatmul.bf16.gmra.mxu0 %v480
        %v656 = vpop.f32.mrf.mxu0
        %v657 = vadd.f32 %v428, %v656
        %v658 = vpop.f32.mrf.mxu0
        %v659 = vadd.f32 %v433, %v658
        %660 = vmatmul.bf16.gmra.mxu0 %v483
        %v661 = vpop.f32.mrf.mxu0
        %v662 = vadd.f32 %v438, %v661
        %v663 = vpop.f32.mrf.mxu0
        %v664 = vadd.f32 %v443, %v663
        %665 = vmatmul.bf16.gmra.mxu0 %v486
        %v666 = vpop.f32.mrf.mxu0
        %v667 = vadd.f32 %v448, %v666
        %v668 = vpop.f32.mrf.mxu0
        %v669 = vadd.f32 %v453, %v668
        %670 = vdwg.mxu0
        %671 = vmatpush.bf16.xpose.msra.mxu0 %v582
        %672 = vmatpush.bf16.xpose.msra.mxu0 %v579
        %673 = vmatpush.bf16.xpose.msra.mxu0 %v576
        %674 = vmatpush.bf16.xpose.msra.mxu0 %v573
        %675 = vmatpush.bf16.xpose.msra.mxu0 %v570
        %676 = vmatpush.bf16.xpose.msra.mxu0 %v567
        %677 = vmatpush.bf16.xpose.msra.mxu0 %v564
        %678 = vmatpush.bf16.xpose.msra.mxu0 %v561
        %679 = vmatmul.bf16.gmra.mxu0 %v477
        %v680 = vpop.f32.mrf.mxu0
        %v681 = vadd.f32 %v418, %v680
        %v682 = vpop.f32.mrf.mxu0
        %v683 = vadd.f32 %v423, %v682
        %684 = vmatmul.bf16.gmra.mxu0 %v480
        %v685 = vpop.f32.mrf.mxu0
        %v686 = vadd.f32 %v428, %v685
        %v687 = vpop.f32.mrf.mxu0
        %v688 = vadd.f32 %v433, %v687
        %689 = vmatmul.bf16.gmra.mxu0 %v483
        %v690 = vpop.f32.mrf.mxu0
        %v691 = vadd.f32 %v438, %v690
        %v692 = vpop.f32.mrf.mxu0
        %v693 = vadd.f32 %v443, %v692
        %694 = vmatmul.bf16.gmra.mxu0 %v486
        %v695 = vpop.f32.mrf.mxu0
        %v696 = vadd.f32 %v448, %v695
        %v697 = vpop.f32.mrf.mxu0
        %v698 = vadd.f32 %v453, %v697
        %699 = vdwg.mxu0
        %v700 = vmax.f32 %v594, 0.0
        %v701 = vmax.f32 %v623, 0.0
        %v702 = vmax.f32 %v652, 0.0
        %v703 = vmax.f32 %v681, 0.0
        %v704 = vmax.f32 %v596, 0.0
        %v705 = vmax.f32 %v625, 0.0
        %v706 = vmax.f32 %v654, 0.0
        %v707 = vmax.f32 %v683, 0.0
        %v708 = vmax.f32 %v599, 0.0
        %v709 = vmax.f32 %v628, 0.0
        %v710 = vmax.f32 %v657, 0.0
        %v711 = vmax.f32 %v686, 0.0
        %v712 = vmax.f32 %v601, 0.0
        %v713 = vmax.f32 %v630, 0.0
        %v714 = vmax.f32 %v659, 0.0
        %v715 = vmax.f32 %v688, 0.0
        %v716 = vmax.f32 %v604, 0.0
        %v717 = vmax.f32 %v633, 0.0
        %v718 = vmax.f32 %v662, 0.0
        %v719 = vmax.f32 %v691, 0.0
        %v720 = vmax.f32 %v606, 0.0
        %v721 = vmax.f32 %v635, 0.0
        %v722 = vmax.f32 %v664, 0.0
        %v723 = vmax.f32 %v693, 0.0
        %v724 = vmax.f32 %v609, 0.0
        %v725 = vmax.f32 %v638, 0.0
        %v726 = vmax.f32 %v667, 0.0
        %v727 = vmax.f32 %v696, 0.0
        %v728 = vmax.f32 %v611, 0.0
        %v729 = vmax.f32 %v640, 0.0
        %v730 = vmax.f32 %v669, 0.0
        %v731 = vmax.f32 %v698, 0.0
        %v732 = vld [vmem:[%s3] sm:$0xf]
        %v733 = vld [vmem:[%s3 + $0x4] sm:$0xf]
        %v734 = vld [vmem:[%s3 + $0x8] sm:$0xf]
        %v735 = vld [vmem:[%s3 + $0xc] sm:$0xf]
        %v736 = vpack.c.bf16 %v704, %v700
        %v737 = vpack.c.bf16 %v705, %v701
        %v738 = vpack.c.bf16 %v706, %v702
        %v739 = vpack.c.bf16 %v707, %v703
        %v740 = vpack.c.bf16 %v712, %v708
        %v741 = vpack.c.bf16 %v713, %v709
        %v742 = vpack.c.bf16 %v714, %v710
        %v743 = vpack.c.bf16 %v715, %v711
        %v744 = vpack.c.bf16 %v720, %v716
        %v745 = vpack.c.bf16 %v721, %v717
        %v746 = vpack.c.bf16 %v722, %v718
        %v747 = vpack.c.bf16 %v723, %v719
        %v748 = vpack.c.bf16 %v728, %v724
        %v749 = vpack.c.bf16 %v729, %v725
        %v750 = vpack.c.bf16 %v730, %v726
        %v751 = vpack.c.bf16 %v731, %v727
        %v752 = vld [vmem:[%s4] sm:$0xff]
        %v753 = vld [vmem:[%s4 + $0x8] sm:$0xff]
        %v754 = vld [vmem:[%s4 + $0x10] sm:$0xff]
        %v755 = vld [vmem:[%s4 + $0x18] sm:$0xff]
        %757 = vset.pattern.permute.xlu0 0
        %758 = vperm.xlu0 %757, %v752
        %v759 = vpop.permute.xlu0 %758
        %762 = vset.pattern.permute.xlu0 0
        %763 = vperm.xlu0 %762, %v753
        %v764 = vpop.permute.xlu0 %763
        %767 = vset.pattern.permute.xlu0 0
        %768 = vperm.xlu0 %767, %v754
        %v769 = vpop.permute.xlu0 %768
        %772 = vset.pattern.permute.xlu0 0
        %773 = vperm.xlu0 %772, %v755
        %v774 = vpop.permute.xlu0 %773
        %v780 = vunpack.c.l.b16 %v732
        %v781 = vunpack.c.l.b16 %v733
        %v782 = vunpack.c.l.b16 %v734
        %v783 = vunpack.c.l.b16 %v735
        %v784 = vpack.c.b16 %v781, %v780
        %v785 = vpack.c.b16 %v783, %v782
        %vm786 = vcmask 523264
        %v788 = vsel %vm786, %v784, 0
        %v791 = vsel %vm786, %v785, 0
        %793 = vmatpush.bf16.msra.mxu0 0
        %794 = vmatpush.bf16.msra.mxu0 0
        %795 = vmatpush.bf16.msra.mxu0 0
        %796 = vmatpush.bf16.msra.mxu0 0
        %797 = vmatpush.bf16.msra.mxu0 %v748
        %798 = vmatpush.bf16.msra.mxu0 %v744
        %799 = vmatpush.bf16.msra.mxu0 %v740
        %800 = vmatpush.bf16.msra.mxu0 %v736
        %801 = vmatmul.bf16.gmra.mxu0 %v788
        %v802 = vpop.f32.mrf.mxu0
        %v803 = vadd.f32 %v759, %v802
        %v804 = vpop.f32.mrf.mxu0
        %v805 = vadd.f32 %v764, %v804
        %806 = vmatmul.bf16.gmra.mxu0 %v791
        %v807 = vpop.f32.mrf.mxu0
        %v808 = vadd.f32 %v769, %v807
        %v809 = vpop.f32.mrf.mxu0
        %v810 = vadd.f32 %v774, %v809
        %811 = vdwg.mxu0
        %812 = vmatpush.bf16.msra.mxu0 0
        %813 = vmatpush.bf16.msra.mxu0 0
        %814 = vmatpush.bf16.msra.mxu0 0
        %815 = vmatpush.bf16.msra.mxu0 0
        %816 = vmatpush.bf16.msra.mxu0 %v749
        %817 = vmatpush.bf16.msra.mxu0 %v745
        %818 = vmatpush.bf16.msra.mxu0 %v741
        %819 = vmatpush.bf16.msra.mxu0 %v737
        %820 = vmatmul.bf16.gmra.mxu0 %v788
        %v821 = vpop.f32.mrf.mxu0
        %v822 = vadd.f32 %v759, %v821
        %v823 = vpop.f32.mrf.mxu0
        %v824 = vadd.f32 %v764, %v823
        %825 = vmatmul.bf16.gmra.mxu0 %v791
        %v826 = vpop.f32.mrf.mxu0
        %v827 = vadd.f32 %v769, %v826
        %v828 = vpop.f32.mrf.mxu0
        %v829 = vadd.f32 %v774, %v828
        %830 = vdwg.mxu0
        %831 = vmatpush.bf16.msra.mxu0 0
        %832 = vmatpush.bf16.msra.mxu0 0
        %833 = vmatpush.bf16.msra.mxu0 0
        %834 = vmatpush.bf16.msra.mxu0 0
        %835 = vmatpush.bf16.msra.mxu0 %v750
        %836 = vmatpush.bf16.msra.mxu0 %v746
        %837 = vmatpush.bf16.msra.mxu0 %v742
        %838 = vmatpush.bf16.msra.mxu0 %v738
        %839 = vmatmul.bf16.gmra.mxu0 %v788
        %v840 = vpop.f32.mrf.mxu0
        %v841 = vadd.f32 %v759, %v840
        %v842 = vpop.f32.mrf.mxu0
        %v843 = vadd.f32 %v764, %v842
        %844 = vmatmul.bf16.gmra.mxu0 %v791
        %v845 = vpop.f32.mrf.mxu0
        %v846 = vadd.f32 %v769, %v845
        %v847 = vpop.f32.mrf.mxu0
        %v848 = vadd.f32 %v774, %v847
        %849 = vdwg.mxu0
        %850 = vmatpush.bf16.msra.mxu0 0
        %851 = vmatpush.bf16.msra.mxu0 0
        %852 = vmatpush.bf16.msra.mxu0 0
        %853 = vmatpush.bf16.msra.mxu0 0
        %854 = vmatpush.bf16.msra.mxu0 %v751
        %855 = vmatpush.bf16.msra.mxu0 %v747
        %856 = vmatpush.bf16.msra.mxu0 %v743
        %857 = vmatpush.bf16.msra.mxu0 %v739
        %858 = vmatmul.bf16.gmra.mxu0 %v788
        %v859 = vpop.f32.mrf.mxu0
        %v860 = vadd.f32 %v759, %v859
        %v861 = vpop.f32.mrf.mxu0
        %v862 = vadd.f32 %v764, %v861
        %863 = vmatmul.bf16.gmra.mxu0 %v791
        %v864 = vpop.f32.mrf.mxu0
        %v865 = vadd.f32 %v769, %v864
        %v866 = vpop.f32.mrf.mxu0
        %v867 = vadd.f32 %v774, %v866
        %868 = vdwg.mxu0
        %v869 = vmax.f32 %v803, 0.0
        %v870 = vmax.f32 %v822, 0.0
        %v871 = vmax.f32 %v841, 0.0
        %v872 = vmax.f32 %v860, 0.0
        %v873 = vmax.f32 %v805, 0.0
        %v874 = vmax.f32 %v824, 0.0
        %v875 = vmax.f32 %v843, 0.0
        %v876 = vmax.f32 %v862, 0.0
        %v877 = vmax.f32 %v808, 0.0
        %v878 = vmax.f32 %v827, 0.0
        %v879 = vmax.f32 %v846, 0.0
        %v880 = vmax.f32 %v865, 0.0
        %v881 = vmax.f32 %v810, 0.0
        %v882 = vmax.f32 %v829, 0.0
        %v883 = vmax.f32 %v848, 0.0
        %v884 = vmax.f32 %v867, 0.0
        %v885 = vld [vmem:[%s5] sm:$0x1]
        %v886 = vpack.c.bf16 %v873, %v869
        %v887 = vpack.c.bf16 %v874, %v870
        %v888 = vpack.c.bf16 %v875, %v871
        %v889 = vpack.c.bf16 %v876, %v872
        %v890 = vpack.c.bf16 %v881, %v877
        %v891 = vpack.c.bf16 %v882, %v878
        %v892 = vpack.c.bf16 %v883, %v879
        %v893 = vpack.c.bf16 %v884, %v880
        %v894 = vld [vmem:[#allocation2] sm:$0x1]
        %896 = vset.pattern.permute.xlu0 0
        %897 = vperm.xlu0 %896, %v894
        %v898 = vpop.permute.xlu0 %897
        %v900 = vperm.slane %v898, 0
        %vm901 = vcmask 261120
        %v903 = vsel %vm901, %v885, 0
        %905 = vmatpush.bf16.msra.mxu0 0
        %906 = vmatpush.bf16.msra.mxu0 0
        %907 = vmatpush.bf16.msra.mxu0 0
        %908 = vmatpush.bf16.msra.mxu0 0
        %909 = vmatpush.bf16.msra.mxu0 0
        %910 = vmatpush.bf16.msra.mxu0 0
        %911 = vmatpush.bf16.msra.mxu0 %v890
        %912 = vmatpush.bf16.msra.mxu0 %v886
        %913 = vmatmul.bf16.gmra.mxu0 %v903
        %v914 = vpop.f32.mrf.mxu0
        %v915 = vadd.f32 %v900, %v914
        %v916 = vpop.f32.mrf.mxu0
        %917 = vdwg.mxu0
        %918 = vmatpush.bf16.msra.mxu0 0
        %919 = vmatpush.bf16.msra.mxu0 0
        %920 = vmatpush.bf16.msra.mxu0 0
        %921 = vmatpush.bf16.msra.mxu0 0
        %922 = vmatpush.bf16.msra.mxu0 0
        %923 = vmatpush.bf16.msra.mxu0 0
        %924 = vmatpush.bf16.msra.mxu0 %v891
        %925 = vmatpush.bf16.msra.mxu0 %v887
        %926 = vmatmul.bf16.gmra.mxu0 %v903
        %v927 = vpop.f32.mrf.mxu0
        %v928 = vadd.f32 %v900, %v927
        %v929 = vpop.f32.mrf.mxu0
        %930 = vdwg.mxu0
        %931 = vmatpush.bf16.msra.mxu0 0
        %932 = vmatpush.bf16.msra.mxu0 0
        %933 = vmatpush.bf16.msra.mxu0 0
        %934 = vmatpush.bf16.msra.mxu0 0
        %935 = vmatpush.bf16.msra.mxu0 0
        %936 = vmatpush.bf16.msra.mxu0 0
        %937 = vmatpush.bf16.msra.mxu0 %v892
        %938 = vmatpush.bf16.msra.mxu0 %v888
        %939 = vmatmul.bf16.gmra.mxu0 %v903
        %v940 = vpop.f32.mrf.mxu0
        %v941 = vadd.f32 %v900, %v940
        %v942 = vpop.f32.mrf.mxu0
        %943 = vdwg.mxu0
        %944 = vmatpush.bf16.msra.mxu0 0
        %945 = vmatpush.bf16.msra.mxu0 0
        %946 = vmatpush.bf16.msra.mxu0 0
        %947 = vmatpush.bf16.msra.mxu0 0
        %948 = vmatpush.bf16.msra.mxu0 0
        %949 = vmatpush.bf16.msra.mxu0 0
        %950 = vmatpush.bf16.msra.mxu0 %v893
        %951 = vmatpush.bf16.msra.mxu0 %v889
        %952 = vmatmul.bf16.gmra.mxu0 %v903
        %v953 = vpop.f32.mrf.mxu0
        %v954 = vadd.f32 %v900, %v953
        %v955 = vpop.f32.mrf.mxu0
        %956 = vdwg.mxu0
        %v961 = vrot.slane %v928, 7
        %v962 = vrot.slane %v941, 6
        %v963 = vrot.slane %v954, 5
        %vm964 = vcmask 1040384
        %v965 = vsel %vm964, %v915, %v961
        %vm966 = vcmask 1042434
        %v967 = vsel %vm966, %v962, %v963
        %vm968 = vcmask 1041408
        %v969 = vsel %vm968, %v965, %v967
        %v971 = vlaneseq
        %vm972 = vcmp.ge.s32.totalorder %v971, 0
        %vm973 = vcmp.lt.s32.totalorder %v971, 512
        %vm974 = vmand %vm972, %vm973
        %975 = vst.msk [vmem:[%s286] sm:$0xf] %vm974, %v969
        %s976 = sand.u32 %s183, 1
        %s977 = scalar_lea.sflag [#allocation4], %s976
        %s978 = sand.u32 %s183, 1
        %s979 = smul.addr %s978, 4
        %s980 = scalar_lea.vmem [#allocation3], %s979
        // Predicated region
        $region49: #{saint_model_forward.1} parent=47 // pred_check
          %p981 = pneg %p193
        $region50: #{saint_model_forward.1} parent=47 // pred_check_branch
          %983 = sbr.rel (%p981) target = $region52
        $region51: #{saint_model_forward.1} parent=47 // pred_region
          %s984 = smul.u32 4, %s23
          %986 = vsyncadd %s977, 0
          %s987 = scalar_lea.hbm %s7, %s984
          %s989 = sshll.u32 %s980, 4
          %s990 = int_to_ptr.vmem [resolvable:$true] %s989
          %s991 = sshll.u32 %s987, 4
          %s992 = int_to_ptr.hbm [resolvable:$true] %s991
          %994 = dma.vmem_to_hbm [thread:$0]  %s990, 64, %s992, %s977
        $region52: #{saint_model_forward.1} parent=47 // pred_fallthru
          _
      $region48: #{saint_model_forward.1} parent=5 // pred_fallthru
        _
      %p995 = scmp.le.s32.totalorder 2, %s18
      // Predicated region
      $region53: #{saint_model_forward.1} parent=5 // pred_check
        %p996 = pneg %p995
      $region54: #{saint_model_forward.1} parent=5 // pred_check_branch
        %998 = sbr.rel (%p996) target = $region56
      $region55: #{saint_model_forward.1} parent=5 // pred_region
        %s999 = ssub.s32 %s18, 2
        // Predicated region
        $region57: #{saint_model_forward.1} parent=55 // pred_check
          %p1000 = pneg %p199
        $region58: #{saint_model_forward.1} parent=55 // pred_check_branch
          %1002 = sbr.rel (%p1000) target = $region60
        $region59: #{saint_model_forward.1} parent=55 // pred_region
          %s1003 = sand.u32 %s184, 1
          %s1004 = scalar_lea.sflag [#allocation4], %s1003
          %s1005 = sand.u32 %s184, 1
          %s1006 = smul.addr %s1005, 4
          %s1007 = scalar_lea.vmem [#allocation3], %s1006
          %1009 = dma.done %s1004, 64
        $region60: #{saint_model_forward.1} parent=55 // pred_fallthru
          _
      $region56: #{saint_model_forward.1} parent=5 // pred_fallthru
        _
    $region6: #{saint_model_forward.1} parent=1 // loop_footer
      %s22 = sadd.s32 1, %s18
    $region7: #{saint_model_forward.1} parent=1 // loop_footer_branch
      %17 = sbr.rel target = $region3
    $region8: #{saint_model_forward.1} parent=1 // loop_exit
      _
    %1010 = vsyncpa [#allocation4], 1
    %s1011 = scalar_lea.sflag [#allocation4], 1
    %1012 = vsyncpa %s1011, 1

</llo_original>
